<compile_context>
chip_gen: v7x
topology: tpu7x:2x2x1
jax: 0.10.0
libtpu: 0.0.40
codegen_flags: <defaults>
</compile_context>

<pallas_src>
import numpy as np
import jax
import jax.numpy as jnp
from jax.experimental import pallas as pl
from jax.experimental.pallas import tpu as pltpu


# ---------------- constant filter weights (match the PyTorch code) ----------
def _np_gaussian_1d(width=7, sigma=3.0):
    assert width % 2 == 1
    if sigma <= 0:
        sigma = float(width) / 4
    r = np.arange(-(width // 2), width // 2 + 1, dtype=np.float32)
    return np.exp(-0.5 * r * r / (sigma * sigma)).astype(np.float32)


_G1 = _np_gaussian_1d(7, 3.0)                       # raw 1-D taps
_GN = (_G1 / _G1.sum()).astype(np.float32)          # _GN (x) _GN == normalized 2-D gaussian
_GAUSS2D = _G1.reshape(-1, 1) * _G1
_GAUSS2D = (_GAUSS2D / _GAUSS2D.sum()).astype(np.float32)

_KA = np.array([[-1, 0, -1], [-1, 0, 1], [-1, 0, 1]], np.float32)   # "a" 3x3
_KB = np.array([[-1, -1, -1], [0, 0, 0], [1, 1, 1]], np.float32)    # "b" 3x3


def _band_matrix(n, taps):
    """n x n banded matrix B with B[i, i+d] = taps[d + r] (zero outside = zero pad)."""
    r = len(taps) // 2
    b = np.zeros((n, n), np.float32)
    for d in range(-r, r + 1):
        idx = np.arange(max(0, -d), min(n, n - d))
        b[idx, idx + d] = taps[d + r]
    return b


def _pick_bn(n, cap=8):
    """Largest divisor of n that is <= cap (batch elements per grid step)."""
    for bn in range(min(n, cap), 0, -1):
        if n % bn == 0:
            return bn
    return 1


# ---------------- Pallas kernel ---------------------------------------------
def _make_kernel(H, W, BN, inv_count):
    def kernel(xpad_ref, bv_ref, bc_ref, out_ref, acc_ref):
        n = pl.program_id(0)

        bv = bv_ref[...]          # (H, H) banded gaussian (vertical pass)
        bc = bc_ref[...]          # (W, W) banded gaussian (horizontal pass)

        g_sum = jnp.zeros((H, W), jnp.float32)
        for b in range(BN):       # small static unroll over batch sub-block
            xp = xpad_ref[b]                      # (H+2, W+2), loaded once
            a0 = xp[0:H, :]                       # three row bands
            a1 = xp[1:H + 1, :]
            a2 = xp[2:H + 2, :]
            a0c0, a0c1, a0c2 = a0[:, 0:W], a0[:, 1:W + 1], a0[:, 2:W + 2]
            a1c0, a1c2 = a1[:, 0:W], a1[:, 2:W + 2]
            a2c0, a2c1, a2c2 = a2[:, 0:W], a2[:, 1:W + 1], a2[:, 2:W + 2]

            # -- 3x3 gradient cross-correlation: weights are +/-1 -> adds only
            gx = jnp.abs((a1c2 + a2c2 - a0c2) - (a0c0 + a1c0 + a2c0))
            gy = jnp.abs((a2c0 + a2c1 + a2c2) - (a0c0 + a0c1 + a0c2))

            # -- 7x7 gaussian (pad=3) as separable banded matmuls on the MXU
            dx = jnp.dot(jnp.dot(bv, gx, preferred_element_type=jnp.float32),
                         bc, preferred_element_type=jnp.float32)
            dy = jnp.dot(jnp.dot(bv, gy, preferred_element_type=jnp.float32),
                         bc, preferred_element_type=jnp.float32)

            # Dx/Lx with Lx = sqrt(Dx)  ->  sqrt(Dx)   (no divide)
            term_x = jnp.sqrt(dx)
            # Dy/Ly with Ly = |Dy|: EUP reciprocal + 1 Newton step (no divide)
            ly = jnp.abs(dy)
            r = pl.reciprocal(ly, approx=True)
            r = r * (2.0 - ly * r)
            term_y = dy * r

            g_sum = g_sum + term_x + term_y + 0.0002

        @pl.when(n == 0)
        def _():
            acc_ref[...] = jnp.zeros_like(acc_ref)
            out_ref[...] = jnp.zeros_like(out_ref)

        acc_ref[...] += g_sum     # elementwise accumulate; no per-step reduction

        @pl.when(n == pl.num_programs(0) - 1)
        def _():
            out_ref[...] = (jnp.sum(acc_ref[...]) * inv_count).reshape(1, 1)

    return kernel


def lor_loss(x):
    """x: (N, 1, H, W) float32 (PyTorch NCHW, single channel). Returns scalar."""
    N, C, H, W = x.shape
    assert C == 1, "LORLoss gradient_operator expects a single input channel"

    # glue: squeeze channel, zero-pad spatially by 1 for the 3x3 conv
    xpad = jnp.pad(x[:, 0, :, :], ((0, 0), (1, 1), (1, 1)))  # (N, H+2, W+2)

    bv = jnp.asarray(_band_matrix(H, _GN))   # (H, H)
    bc = jnp.asarray(_band_matrix(W, _GN))   # (W, W)

    BN = _pick_bn(N)
    grid = (N // BN,)
    inv_count = 1.0 / float(N * H * W)

    out = pl.pallas_call(
        _make_kernel(H, W, BN, inv_count),
        out_shape=jax.ShapeDtypeStruct((1, 1), jnp.float32),
        grid_spec=pltpu.PrefetchScalarGridSpec(
            num_scalar_prefetch=0,
            grid=grid,
            in_specs=[
                pl.BlockSpec((BN, H + 2, W + 2), lambda n: (n, 0, 0)),
                pl.BlockSpec((H, H), lambda n: (0, 0)),
                pl.BlockSpec((W, W), lambda n: (0, 0)),
            ],
            out_specs=pl.BlockSpec((1, 1), lambda n: (0, 0)),
            scratch_shapes=[pltpu.VMEM((H, W), jnp.float32)],
        ),
        compiler_params=pltpu.CompilerParams(
            dimension_semantics=("arbitrary",)),
    )(xpad, bv, bc)
    return out[0, 0]


# ---------------- pure-JAX reference (mirrors the PyTorch forward) ----------
def lor_loss_ref(x):
    ka = jnp.asarray(_KA).reshape(1, 1, 3, 3)
    kb = jnp.asarray(_KB).reshape(1, 1, 3, 3)
    gw = jnp.asarray(_GAUSS2D).reshape(1, 1, 7, 7)

    def conv(inp, w, p):
        return jax.lax.conv_general_dilated(
            inp, w, (1, 1), [(p, p), (p, p)],
            dimension_numbers=("NCHW", "OIHW", "NCHW"),
            precision=jax.lax.Precision.HIGHEST)

    gx = jnp.abs(conv(x, ka, 1))
    gy = jnp.abs(conv(x, kb, 1))
    dx = conv(gx, gw, 3)
    dy = conv(gy, gw, 3)
    lx = jnp.sqrt(conv(gx, gw, 3))
    ly = jnp.abs(conv(gy, gw, 3))
    g = dx / lx + 0.0001 + (dy / ly + 0.0001)
    return jnp.mean(g)


if __name__ == "__main__":
    key = jax.random.PRNGKey(0)
    x = jax.random.normal(key, (2, 1, 16, 16), dtype=jnp.float32)

    loss = jax.block_until_ready(lor_loss(x))
    ref = jax.block_until_ready(lor_loss_ref(x))

    assert jnp.isfinite(loss), "non-finite loss"
    assert jnp.allclose(loss, ref, rtol=2e-3, atol=1e-4), (loss, ref)
    print("KERNEL_OK")
</pallas_src>

<mosaic_0001>
module attributes {stable_mosaic.version = 11 : i64} {
  func.func @kernel(%arg0: i32, %arg1: memref<2x18x18xf32, #tpu.memory_space<vmem>>, %arg2: memref<16x16xf32, #tpu.memory_space<vmem>>, %arg3: memref<16x16xf32, #tpu.memory_space<vmem>>, %arg4: memref<1x1xf32, #tpu.memory_space<vmem>>, %arg5: memref<16x16xf32, #tpu.memory_space<vmem>>) attributes {dimension_semantics = [#tpu.dimension_semantics<arbitrary>], iteration_bounds = array<i64: 1>, scalar_prefetch = 0 : i64, scratch_operands = 1 : i64, tpu.core_type = #tpu.core_type<tc>, window_params = [{transform_indices = @transform_0, window_bounds = array<i64: 2, 18, 18>}, {pipeline_mode = #tpu.pipeline_mode<synchronous>, transform_indices = @transform_1, window_bounds = array<i64: 16, 16>}, {pipeline_mode = #tpu.pipeline_mode<synchronous>, transform_indices = @transform_2, window_bounds = array<i64: 16, 16>}, {pipeline_mode = #tpu.pipeline_mode<synchronous>, transform_indices = @transform_3, window_bounds = array<i64: 1, 1>}]} {
    %c0 = arith.constant 0 : index
    %c0_0 = arith.constant 0 : index
    %0 = vector.load %arg2[%c0, %c0_0] : memref<16x16xf32, #tpu.memory_space<vmem>>, vector<16x16xf32>
    %c0_1 = arith.constant 0 : index
    %c0_2 = arith.constant 0 : index
    %1 = vector.load %arg3[%c0_1, %c0_2] : memref<16x16xf32, #tpu.memory_space<vmem>>, vector<16x16xf32>
    %cst = arith.constant 0.000000e+00 : f32
    %2 = vector.broadcast %cst : f32 to vector<16x16xf32>
    %c0_3 = arith.constant 0 : index
    %c0_4 = arith.constant 0 : index
    %c0_5 = arith.constant 0 : index
    %3 = vector.load %arg1[%c0_3, %c0_4, %c0_5] : memref<2x18x18xf32, #tpu.memory_space<vmem>>, vector<1x18x18xf32>
    %4 = vector.shape_cast %3 : vector<1x18x18xf32> to vector<18x18xf32>
    %5 = vector.extract_strided_slice %4 {offsets = [0, 0], sizes = [16, 18], strides = [1, 1]} : vector<18x18xf32> to vector<16x18xf32>
    %6 = vector.extract_strided_slice %4 {offsets = [1, 0], sizes = [16, 18], strides = [1, 1]} : vector<18x18xf32> to vector<16x18xf32>
    %7 = vector.extract_strided_slice %4 {offsets = [2, 0], sizes = [16, 18], strides = [1, 1]} : vector<18x18xf32> to vector<16x18xf32>
    %8 = vector.extract_strided_slice %5 {offsets = [0, 0], sizes = [16, 16], strides = [1, 1]} : vector<16x18xf32> to vector<16x16xf32>
    %9 = vector.extract_strided_slice %5 {offsets = [0, 1], sizes = [16, 16], strides = [1, 1]} : vector<16x18xf32> to vector<16x16xf32>
    %10 = vector.extract_strided_slice %5 {offsets = [0, 2], sizes = [16, 16], strides = [1, 1]} : vector<16x18xf32> to vector<16x16xf32>
    %11 = vector.extract_strided_slice %6 {offsets = [0, 0], sizes = [16, 16], strides = [1, 1]} : vector<16x18xf32> to vector<16x16xf32>
    %12 = vector.extract_strided_slice %6 {offsets = [0, 2], sizes = [16, 16], strides = [1, 1]} : vector<16x18xf32> to vector<16x16xf32>
    %13 = vector.extract_strided_slice %7 {offsets = [0, 0], sizes = [16, 16], strides = [1, 1]} : vector<16x18xf32> to vector<16x16xf32>
    %14 = vector.extract_strided_slice %7 {offsets = [0, 1], sizes = [16, 16], strides = [1, 1]} : vector<16x18xf32> to vector<16x16xf32>
    %15 = vector.extract_strided_slice %7 {offsets = [0, 2], sizes = [16, 16], strides = [1, 1]} : vector<16x18xf32> to vector<16x16xf32>
    %16 = arith.addf %12, %15 : vector<16x16xf32>
    %17 = arith.subf %16, %10 : vector<16x16xf32>
    %18 = arith.addf %8, %11 : vector<16x16xf32>
    %19 = arith.addf %18, %13 : vector<16x16xf32>
    %20 = arith.subf %17, %19 : vector<16x16xf32>
    %21 = math.absf %20 : vector<16x16xf32>
    %22 = arith.addf %13, %14 : vector<16x16xf32>
    %23 = arith.addf %22, %15 : vector<16x16xf32>
    %24 = arith.addf %8, %9 : vector<16x16xf32>
    %25 = arith.addf %24, %10 : vector<16x16xf32>
    %26 = arith.subf %23, %25 : vector<16x16xf32>
    %27 = math.absf %26 : vector<16x16xf32>
    %cst_6 = arith.constant dense<0.000000e+00> : vector<16x16xf32>
    %28 = tpu.matmul %0, %21, %cst_6 {dimension_numbers = #tpu.dot_dimension_numbers<[1], [0], [0], [1], [0, 0, 1, 1], [], []>} : vector<16x16xf32>, vector<16x16xf32>, vector<16x16xf32> -> vector<16x16xf32>
    %cst_7 = arith.constant dense<0.000000e+00> : vector<16x16xf32>
    %29 = tpu.matmul %28, %1, %cst_7 {dimension_numbers = #tpu.dot_dimension_numbers<[1], [0], [0], [1], [0, 0, 1, 1], [], []>} : vector<16x16xf32>, vector<16x16xf32>, vector<16x16xf32> -> vector<16x16xf32>
    %cst_8 = arith.constant dense<0.000000e+00> : vector<16x16xf32>
    %30 = tpu.matmul %0, %27, %cst_8 {dimension_numbers = #tpu.dot_dimension_numbers<[1], [0], [0], [1], [0, 0, 1, 1], [], []>} : vector<16x16xf32>, vector<16x16xf32>, vector<16x16xf32> -> vector<16x16xf32>
    %cst_9 = arith.constant dense<0.000000e+00> : vector<16x16xf32>
    %31 = tpu.matmul %30, %1, %cst_9 {dimension_numbers = #tpu.dot_dimension_numbers<[1], [0], [0], [1], [0, 0, 1, 1], [], []>} : vector<16x16xf32>, vector<16x16xf32>, vector<16x16xf32> -> vector<16x16xf32>
    %32 = math.sqrt %29 : vector<16x16xf32>
    %33 = math.absf %31 : vector<16x16xf32>
    %34 = tpu.reciprocal %33 {approx = true} : vector<16x16xf32> -> vector<16x16xf32>
    %35 = arith.mulf %33, %34 : vector<16x16xf32>
    %cst_10 = arith.constant 2.000000e+00 : f32
    %36 = vector.broadcast %cst_10 : f32 to vector<16x16xf32>
    %37 = arith.subf %36, %35 : vector<16x16xf32>
    %38 = arith.mulf %34, %37 : vector<16x16xf32>
    %39 = arith.mulf %31, %38 : vector<16x16xf32>
    %40 = arith.addf %2, %32 : vector<16x16xf32>
    %41 = arith.addf %40, %39 : vector<16x16xf32>
    %cst_11 = arith.constant 2.000000e-04 : f32
    %42 = vector.broadcast %cst_11 : f32 to vector<16x16xf32>
    %43 = arith.addf %41, %42 : vector<16x16xf32>
    %c1 = arith.constant 1 : index
    %c0_12 = arith.constant 0 : index
    %c0_13 = arith.constant 0 : index
    %44 = vector.load %arg1[%c1, %c0_12, %c0_13] : memref<2x18x18xf32, #tpu.memory_space<vmem>>, vector<1x18x18xf32>
    %45 = vector.shape_cast %44 : vector<1x18x18xf32> to vector<18x18xf32>
    %46 = vector.extract_strided_slice %45 {offsets = [0, 0], sizes = [16, 18], strides = [1, 1]} : vector<18x18xf32> to vector<16x18xf32>
    %47 = vector.extract_strided_slice %45 {offsets = [1, 0], sizes = [16, 18], strides = [1, 1]} : vector<18x18xf32> to vector<16x18xf32>
    %48 = vector.extract_strided_slice %45 {offsets = [2, 0], sizes = [16, 18], strides = [1, 1]} : vector<18x18xf32> to vector<16x18xf32>
    %49 = vector.extract_strided_slice %46 {offsets = [0, 0], sizes = [16, 16], strides = [1, 1]} : vector<16x18xf32> to vector<16x16xf32>
    %50 = vector.extract_strided_slice %46 {offsets = [0, 1], sizes = [16, 16], strides = [1, 1]} : vector<16x18xf32> to vector<16x16xf32>
    %51 = vector.extract_strided_slice %46 {offsets = [0, 2], sizes = [16, 16], strides = [1, 1]} : vector<16x18xf32> to vector<16x16xf32>
    %52 = vector.extract_strided_slice %47 {offsets = [0, 0], sizes = [16, 16], strides = [1, 1]} : vector<16x18xf32> to vector<16x16xf32>
    %53 = vector.extract_strided_slice %47 {offsets = [0, 2], sizes = [16, 16], strides = [1, 1]} : vector<16x18xf32> to vector<16x16xf32>
    %54 = vector.extract_strided_slice %48 {offsets = [0, 0], sizes = [16, 16], strides = [1, 1]} : vector<16x18xf32> to vector<16x16xf32>
    %55 = vector.extract_strided_slice %48 {offsets = [0, 1], sizes = [16, 16], strides = [1, 1]} : vector<16x18xf32> to vector<16x16xf32>
    %56 = vector.extract_strided_slice %48 {offsets = [0, 2], sizes = [16, 16], strides = [1, 1]} : vector<16x18xf32> to vector<16x16xf32>
    %57 = arith.addf %53, %56 : vector<16x16xf32>
    %58 = arith.subf %57, %51 : vector<16x16xf32>
    %59 = arith.addf %49, %52 : vector<16x16xf32>
    %60 = arith.addf %59, %54 : vector<16x16xf32>
    %61 = arith.subf %58, %60 : vector<16x16xf32>
    %62 = math.absf %61 : vector<16x16xf32>
    %63 = arith.addf %54, %55 : vector<16x16xf32>
    %64 = arith.addf %63, %56 : vector<16x16xf32>
    %65 = arith.addf %49, %50 : vector<16x16xf32>
    %66 = arith.addf %65, %51 : vector<16x16xf32>
    %67 = arith.subf %64, %66 : vector<16x16xf32>
    %68 = math.absf %67 : vector<16x16xf32>
    %cst_14 = arith.constant dense<0.000000e+00> : vector<16x16xf32>
    %69 = tpu.matmul %0, %62, %cst_14 {dimension_numbers = #tpu.dot_dimension_numbers<[1], [0], [0], [1], [0, 0, 1, 1], [], []>} : vector<16x16xf32>, vector<16x16xf32>, vector<16x16xf32> -> vector<16x16xf32>
    %cst_15 = arith.constant dense<0.000000e+00> : vector<16x16xf32>
    %70 = tpu.matmul %69, %1, %cst_15 {dimension_numbers = #tpu.dot_dimension_numbers<[1], [0], [0], [1], [0, 0, 1, 1], [], []>} : vector<16x16xf32>, vector<16x16xf32>, vector<16x16xf32> -> vector<16x16xf32>
    %cst_16 = arith.constant dense<0.000000e+00> : vector<16x16xf32>
    %71 = tpu.matmul %0, %68, %cst_16 {dimension_numbers = #tpu.dot_dimension_numbers<[1], [0], [0], [1], [0, 0, 1, 1], [], []>} : vector<16x16xf32>, vector<16x16xf32>, vector<16x16xf32> -> vector<16x16xf32>
    %cst_17 = arith.constant dense<0.000000e+00> : vector<16x16xf32>
    %72 = tpu.matmul %71, %1, %cst_17 {dimension_numbers = #tpu.dot_dimension_numbers<[1], [0], [0], [1], [0, 0, 1, 1], [], []>} : vector<16x16xf32>, vector<16x16xf32>, vector<16x16xf32> -> vector<16x16xf32>
    %73 = math.sqrt %70 : vector<16x16xf32>
    %74 = math.absf %72 : vector<16x16xf32>
    %75 = tpu.reciprocal %74 {approx = true} : vector<16x16xf32> -> vector<16x16xf32>
    %76 = arith.mulf %74, %75 : vector<16x16xf32>
    %cst_18 = arith.constant 2.000000e+00 : f32
    %77 = vector.broadcast %cst_18 : f32 to vector<16x16xf32>
    %78 = arith.subf %77, %76 : vector<16x16xf32>
    %79 = arith.mulf %75, %78 : vector<16x16xf32>
    %80 = arith.mulf %72, %79 : vector<16x16xf32>
    %81 = arith.addf %43, %73 : vector<16x16xf32>
    %82 = arith.addf %81, %80 : vector<16x16xf32>
    %cst_19 = arith.constant 2.000000e-04 : f32
    %83 = vector.broadcast %cst_19 : f32 to vector<16x16xf32>
    %84 = arith.addf %82, %83 : vector<16x16xf32>
    %c0_i32 = arith.constant 0 : i32
    %85 = arith.cmpi eq, %arg0, %c0_i32 : i32
    %86 = arith.extui %85 : i1 to i32
    %c0_i32_20 = arith.constant 0 : i32
    %87 = arith.cmpi ne, %86, %c0_i32_20 : i32
    scf.if %87 {
      %cst_27 = arith.constant 0.000000e+00 : f32
      %94 = vector.broadcast %cst_27 : f32 to vector<16x16xf32>
      %c0_28 = arith.constant 0 : index
      %c0_29 = arith.constant 0 : index
      %95 = vector.load %arg5[%c0_28, %c0_29] : memref<16x16xf32, #tpu.memory_space<vmem>>, vector<16x16xf32>
      tpu.vector_store %arg5[%c0_28, %c0_29], %94 {strides = array<i32>} : memref<16x16xf32, #tpu.memory_space<vmem>>, vector<16x16xf32>,
      %cst_30 = arith.constant 0.000000e+00 : f32
      %96 = vector.broadcast %cst_30 : f32 to vector<1x1xf32>
      %c0_31 = arith.constant 0 : index
      %c0_32 = arith.constant 0 : index
      %97 = vector.load %arg4[%c0_31, %c0_32] : memref<1x1xf32, #tpu.memory_space<vmem>>, vector<1x1xf32>
      tpu.vector_store %arg4[%c0_31, %c0_32], %96 {strides = array<i32>} : memref<1x1xf32, #tpu.memory_space<vmem>>, vector<1x1xf32>,
    } else {
    }
    %c0_21 = arith.constant 0 : index
    %c0_22 = arith.constant 0 : index
    %88 = vector.load %arg5[%c0_21, %c0_22] : memref<16x16xf32, #tpu.memory_space<vmem>>, vector<16x16xf32>
    %89 = arith.addf %88, %84 : vector<16x16xf32>
    %c0_23 = arith.constant 0 : index
    %c0_24 = arith.constant 0 : index
    %90 = vector.load %arg5[%c0_23, %c0_24] : memref<16x16xf32, #tpu.memory_space<vmem>>, vector<16x16xf32>
    tpu.vector_store %arg5[%c0_23, %c0_24], %89 {strides = array<i32>} : memref<16x16xf32, #tpu.memory_space<vmem>>, vector<16x16xf32>,
    %c0_i32_25 = arith.constant 0 : i32
    %91 = arith.cmpi eq, %arg0, %c0_i32_25 : i32
    %92 = arith.extui %91 : i1 to i32
    %c0_i32_26 = arith.constant 0 : i32
    %93 = arith.cmpi ne, %92, %c0_i32_26 : i32
    scf.if %93 {
      %c0_27 = arith.constant 0 : index
      %c0_28 = arith.constant 0 : index
      %94 = vector.load %arg5[%c0_27, %c0_28] : memref<16x16xf32, #tpu.memory_space<vmem>>, vector<16x16xf32>
      %95 = vector.shape_cast %94 : vector<16x16xf32> to vector<1x16x16xf32>
      %cst_29 = arith.constant dense<0.000000e+00> : vector<1xf32>
      %96 = vector.multi_reduction <add>, %95, %cst_29 [1, 2] : vector<1x16x16xf32> to vector<1xf32>
      %97 = vector.shape_cast %96 : vector<1xf32> to vector<1x1x1xf32>
      %98 = vector.extract %97[0, 0, 0] : f32 from vector<1x1x1xf32>
      %cst_30 = arith.constant 0.001953125 : f32
      %99 = arith.mulf %98, %cst_30 : f32
      %100 = vector.broadcast %99 : f32 to vector<1x1xf32>
      %c0_31 = arith.constant 0 : index
      %c0_32 = arith.constant 0 : index
      %101 = vector.load %arg4[%c0_31, %c0_32] : memref<1x1xf32, #tpu.memory_space<vmem>>, vector<1x1xf32>
      tpu.vector_store %arg4[%c0_31, %c0_32], %100 {strides = array<i32>} : memref<1x1xf32, #tpu.memory_space<vmem>>, vector<1x1xf32>,
    } else {
    }
    return
  }
  func.func @transform_0(%arg0: i32) -> (i32, i32, i32) {
    %c0_i32 = arith.constant 0 : i32
    %c0_i32_0 = arith.constant 0 : i32
    %c0_i32_1 = arith.constant 0 : i32
    return %arg0, %c0_i32, %c0_i32_0 : i32, i32, i32
  }
  func.func @transform_1(%arg0: i32) -> (i32, i32) {
    %c0_i32 = arith.constant 0 : i32
    %c0_i32_0 = arith.constant 0 : i32
    %c0_i32_1 = arith.constant 0 : i32
    return %c0_i32, %c0_i32_0 : i32, i32
  }
  func.func @transform_2(%arg0: i32) -> (i32, i32) {
    %c0_i32 = arith.constant 0 : i32
    %c0_i32_0 = arith.constant 0 : i32
    %c0_i32_1 = arith.constant 0 : i32
    return %c0_i32, %c0_i32_0 : i32, i32
  }
  func.func @transform_3(%arg0: i32) -> (i32, i32) {
    %c0_i32 = arith.constant 0 : i32
    %c0_i32_0 = arith.constant 0 : i32
    %c0_i32_1 = arith.constant 0 : i32
    return %c0_i32, %c0_i32_0 : i32, i32
  }
}

</mosaic_0001>

<llo_original>
// kernel: tpu_custom_call.1
$region0: #{tpu_custom_call.1}
  #allocation0 [shape = 'u32[]', space=smem, size = 0x4, offset = 0x4, fixed_abs, tag = 'smem constant byte address 0x4 - core index']
  #allocation1 [shape = 'u32[144,128]{1,0:T(1,128)}', space=vmem, size = 0x12000, scoped, tag = 'internal scratch']
  #allocation2 [shape = 'f32[16,16]{1,0:T(8,128)}', space=vmem, size = 0x2000, scoped, tag = 'scratch operand']
  %s0 = inlined_call_operand.vmem [shape: f32[2,18,18], index: 0, kind: input, shape index: {}]
  %s1 = inlined_call_operand.vmem [shape: f32[16,16], index: 1, kind: input, shape index: {}]
  %s2 = inlined_call_operand.vmem [shape: f32[16,16], index: 2, kind: input, shape index: {}]
  %s3 = inlined_call_operand.hbm [shape: f32[1,1], index: 3, kind: output, shape index: {}]
  %s4 = sld [smem:[#allocation0]]
  $region30: #{tpu_custom_call.1} parent=0
    _
  %s6 = ssub.s32 1, %s4
  %s7 = scalar_select 0, %s6, %s4
  $region1: #{tpu_custom_call.1} parent=0
    #allocation3 [shape = 'u8[512]{0}', space=vmem, size = 0x400, scoped, tag = 'output window, operand 0, single buffered']
    #allocation4 [shape = 's32[1]{0}', space=sflag, size = 0x4, scoped, tag = 'scoped memory for tpu_custom_call.1']
    %8 = vsyncpa [#allocation4], 0
    // Predicated region
    $region2: #{tpu_custom_call.1} parent=1 // pred_check
      _
    $region3: #{tpu_custom_call.1} parent=1 // pred_check_branch
      %10 = sbr.rel (0) target = $region5
    $region4: #{tpu_custom_call.1} parent=1 // pred_region
      _
    $region5: #{tpu_custom_call.1} parent=1 // pred_fallthru
      _
    // Predicated region
    $region6: #{tpu_custom_call.1} parent=1 // pred_check
      _
    $region7: #{tpu_custom_call.1} parent=1 // pred_check_branch
      %12 = sbr.rel (0) target = $region9
    $region8: #{tpu_custom_call.1} parent=1 // pred_region
      _
    $region9: #{tpu_custom_call.1} parent=1 // pred_fallthru
      _
    // Predicated region
    $region10: #{tpu_custom_call.1} parent=1 // pred_check
      _
    $region11: #{tpu_custom_call.1} parent=1 // pred_check_branch
      %14 = sbr.rel (0) target = $region13
    $region12: #{tpu_custom_call.1} parent=1 // pred_region
      _
    $region13: #{tpu_custom_call.1} parent=1 // pred_fallthru
      _
    %v15 = vld [vmem:[%s1] sm:$0xff]
    %v16 = vld [vmem:[%s1 + $0x8] sm:$0xff]
    %v17 = vld [vmem:[%s2] sm:$0xff]
    %v18 = vld [vmem:[%s2 + $0x8] sm:$0xff]
    %v19 = vld [vmem:[%s0] sm:$0xff]
    %v20 = vld [vmem:[%s0 + $0x8] sm:$0xff]
    %v21 = vld [vmem:[%s0 + $0x10] sm:$0x3]
    %vm25 = vcmask 1046528
    %v26 = vrot.slane %v19, 1
    %v27 = vrot.slane %v20, 1
    %v28 = vsel %vm25, %v26, %v27
    %v29 = vrot.slane %v21, 1
    %v30 = vsel %vm25, %v27, %v29
    %v34 = vadd.f32 %v19, %v28
    %v35 = vadd.f32 %v20, %v30
    %v36 = vadd.f32 %v21, %v29
    %vm37 = vcmask 1040384
    %v38 = vrot.slane %v19, 7
    %v39 = vrot.slane %v20, 7
    %v40 = vsel %vm37, %v38, %v39
    %v44 = vsub.f32 %v34, %v38
    %v45 = vsub.f32 %v35, %v40
    %v46 = vsub.f32 %v36, %v39
    %vm47 = vcmask 1045504
    %v48 = vrot.slane %v19, 2
    %v49 = vrot.slane %v20, 2
    %v50 = vsel %vm47, %v48, %v49
    %v51 = vrot.slane %v21, 2
    %v52 = vsel %vm47, %v49, %v51
    %v55 = vadd.f32 %v34, %v50
    %v56 = vadd.f32 %v35, %v52
    %v59 = vrot.slane %v55, 7
    %v60 = vrot.slane %v56, 7
    %v61 = vsel %vm37, %v59, %v60
    %62 = vrot.lane.b32.xlu0 %v59, 2
    %v63 = vpop.permute.xlu0 %62
    %64 = vrot.lane.b32.xlu0 %v61, 2
    %v65 = vpop.permute.xlu0 %64
    %66 = vrot.lane.b32.xlu0 %v60, 2
    %v67 = vpop.permute.xlu0 %66
    %v71 = vsub.f32 %v44, %v63
    %v72 = vsub.f32 %v45, %v65
    %v73 = vsub.f32 %v46, %v67
    %v74 = vand.u32 2147483647, %v71
    %v75 = vand.u32 2147483647, %v72
    %v76 = vand.u32 2147483647, %v73
    %77 = vrot.lane.b32.xlu0 %v19, 127
    %v78 = vpop.permute.xlu0 %77
    %79 = vrot.lane.b32.xlu0 %v20, 127
    %v80 = vpop.permute.xlu0 %79
    %81 = vrot.lane.b32.xlu0 %v21, 127
    %v82 = vpop.permute.xlu0 %81
    %v86 = vadd.f32 %v19, %v78
    %v87 = vadd.f32 %v20, %v80
    %v88 = vadd.f32 %v21, %v82
    %89 = vrot.lane.b32.xlu0 %v19, 126
    %v90 = vpop.permute.xlu0 %89
    %91 = vrot.lane.b32.xlu0 %v20, 126
    %v92 = vpop.permute.xlu0 %91
    %93 = vrot.lane.b32.xlu0 %v21, 126
    %v94 = vpop.permute.xlu0 %93
    %v98 = vadd.f32 %v86, %v90
    %v99 = vadd.f32 %v87, %v92
    %v100 = vadd.f32 %v88, %v94
    %vm103 = vcmask 1041408
    %v104 = vrot.slane %v98, 6
    %v105 = vrot.slane %v99, 6
    %v106 = vsel %vm103, %v104, %v105
    %v110 = vsub.f32 %v98, %v104
    %v111 = vsub.f32 %v99, %v106
    %v112 = vsub.f32 %v100, %v105
    %v113 = vand.u32 2147483647, %v110
    %v114 = vand.u32 2147483647, %v111
    %v115 = vand.u32 2147483647, %v112
    %v119 = vrot.slane %v74, 1
    %v120 = vrot.slane %v75, 1
    %v121 = vsel %vm25, %v119, %v120
    %v122 = vrot.slane %v76, 1
    %v123 = vsel %vm25, %v120, %v122
    %124 = vrot.lane.b32.xlu0 %v121, 126
    %v125 = vpop.permute.xlu0 %124
    %126 = vrot.lane.b32.xlu0 %v123, 126
    %v127 = vpop.permute.xlu0 %126
    %vm130 = vcmask 130048
    %v132 = vsel %vm130, %v15, 0
    %v135 = vsel %vm130, %v16, 0
    %137 = vmatprep.subr.mxu0 0.0
    %138 = vmatpush1.msra.mxu0 %v125
    %139 = vmatprep.subr.mxu0 0.0
    %140 = vmatpush1.msra.mxu0 %v127
    %141 = vmatprep.subr.mxu0 0.0
    %142 = vmatpush1.msra.mxu0 0.0
    %143 = vmatprep.subr.mxu0 0.0
    %144 = vmatpush1.msra.mxu0 0.0
    %145 = vmatprep.subr.mxu0 0.0
    %146 = vmatpush1.msra.mxu0 0.0
    %147 = vmatprep.subr.mxu0 0.0
    %148 = vmatpush1.msra.mxu0 0.0
    %149 = vmatprep.subr.mxu0 0.0
    %150 = vmatpush1.msra.mxu0 0.0
    %151 = vmatprep.subr.mxu0 0.0
    %152 = vmatpush1.msra.mxu0 0.0
    %153 = vmatprep.subr.mxu0 0.0
    %154 = vmatpush1.msra.mxu0 0.0
    %155 = vmatprep.subr.mxu0 0.0
    %156 = vmatpush1.msra.mxu0 0.0
    %157 = vmatprep.subr.mxu0 0.0
    %158 = vmatpush1.msra.mxu0 0.0
    %159 = vmatprep.subr.mxu0 0.0
    %160 = vmatpush1.msra.mxu0 0.0
    %161 = vmatprep.subr.mxu0 0.0
    %162 = vmatpush1.msra.mxu0 0.0
    %163 = vmatprep.subr.mxu0 0.0
    %164 = vmatpush1.msra.mxu0 0.0
    %165 = vmatprep.subr.mxu0 0.0
    %166 = vmatpush1.msra.mxu0 0.0
    %167 = vmatprep.subr.mxu0 0.0
    %168 = vmatpush1.msra.mxu0 0.0
    %169 = vmatprep.subr.mxu0 0.0
    %170 = vmatpush1.msra.mxu0 0.0
    %171 = vmatprep.subr.mxu0 0.0
    %172 = vmatpush1.msra.mxu0 0.0
    %173 = vmatprep.subr.mxu0 0.0
    %174 = vmatpush1.msra.mxu0 0.0
    %175 = vmatprep.subr.mxu0 0.0
    %176 = vmatpush1.msra.mxu0 0.0
    %177 = vmatprep.subr.mxu0 0.0
    %178 = vmatpush1.msra.mxu0 0.0
    %179 = vmatprep.subr.mxu0 0.0
    %180 = vmatpush1.msra.mxu0 0.0
    %181 = vmatprep.subr.mxu0 0.0
    %182 = vmatpush1.msra.mxu0 0.0
    %183 = vmatprep.subr.mxu0 0.0
    %184 = vmatpush1.msra.mxu0 0.0
    %185 = vmatprep.subr.mxu0 0.0
    %186 = vmatpush1.msra.mxu0 0.0
    %187 = vmatprep.subr.mxu0 0.0
    %188 = vmatpush1.msra.mxu0 0.0
    %189 = vmatprep.subr.mxu0 0.0
    %190 = vmatpush1.msra.mxu0 0.0
    %191 = vmatprep.subr.mxu0 0.0
    %192 = vmatpush1.msra.mxu0 0.0
    %193 = vmatprep.subr.mxu0 0.0
    %194 = vmatpush1.msra.mxu0 0.0
    %195 = vmatprep.subr.mxu0 0.0
    %196 = vmatpush1.msra.mxu0 0.0
    %197 = vmatprep.subr.mxu0 0.0
    %198 = vmatpush1.msra.mxu0 0.0
    %199 = vmatprep.subr.mxu0 0.0
    %200 = vmatpush1.msra.mxu0 0.0
    %201 = vmatprep.mubr.f32.mxu0 0.0
    %202 = vmatmul.mubr.f32.gmra.mrb[0].mxu0 %v132
    %v203 = vpop.f32.mrb[0].mxu0
    %v204 = vadd.f32 0.0, %v203
    %v205 = vpop.f32.mrb[0].mxu0
    %206 = vmatprep.mubr.f32.mxu0 0.0
    %207 = vmatmul.mubr.f32.gmra.mrb[0].mxu0 %v135
    %v208 = vpop.f32.mrb[0].mxu0
    %v209 = vadd.f32 0.0, %v208
    %v210 = vpop.f32.mrb[0].mxu0
    %211 = vdwg.mxu0
    %v213 = vsel %vm130, %v204, 0
    %v216 = vsel %vm130, %v209, 0
    %218 = vmatprep.subr.mxu0 0.0
    %219 = vmatpush1.msra.mxu0 %v17
    %220 = vmatprep.subr.mxu0 0.0
    %221 = vmatpush1.msra.mxu0 %v18
    %222 = vmatprep.subr.mxu0 0.0
    %223 = vmatpush1.msra.mxu0 0.0
    %224 = vmatprep.subr.mxu0 0.0
    %225 = vmatpush1.msra.mxu0 0.0
    %226 = vmatprep.subr.mxu0 0.0
    %227 = vmatpush1.msra.mxu0 0.0
    %228 = vmatprep.subr.mxu0 0.0
    %229 = vmatpush1.msra.mxu0 0.0
    %230 = vmatprep.subr.mxu0 0.0
    %231 = vmatpush1.msra.mxu0 0.0
    %232 = vmatprep.subr.mxu0 0.0
    %233 = vmatpush1.msra.mxu0 0.0
    %234 = vmatprep.subr.mxu0 0.0
    %235 = vmatpush1.msra.mxu0 0.0
    %236 = vmatprep.subr.mxu0 0.0
    %237 = vmatpush1.msra.mxu0 0.0
    %238 = vmatprep.subr.mxu0 0.0
    %239 = vmatpush1.msra.mxu0 0.0
    %240 = vmatprep.subr.mxu0 0.0
    %241 = vmatpush1.msra.mxu0 0.0
    %242 = vmatprep.subr.mxu0 0.0
    %243 = vmatpush1.msra.mxu0 0.0
    %244 = vmatprep.subr.mxu0 0.0
    %245 = vmatpush1.msra.mxu0 0.0
    %246 = vmatprep.subr.mxu0 0.0
    %247 = vmatpush1.msra.mxu0 0.0
    %248 = vmatprep.subr.mxu0 0.0
    %249 = vmatpush1.msra.mxu0 0.0
    %250 = vmatprep.subr.mxu0 0.0
    %251 = vmatpush1.msra.mxu0 0.0
    %252 = vmatprep.subr.mxu0 0.0
    %253 = vmatpush1.msra.mxu0 0.0
    %254 = vmatprep.subr.mxu0 0.0
    %255 = vmatpush1.msra.mxu0 0.0
    %256 = vmatprep.subr.mxu0 0.0
    %257 = vmatpush1.msra.mxu0 0.0
    %258 = vmatprep.subr.mxu0 0.0
    %259 = vmatpush1.msra.mxu0 0.0
    %260 = vmatprep.subr.mxu0 0.0
    %261 = vmatpush1.msra.mxu0 0.0
    %262 = vmatprep.subr.mxu0 0.0
    %263 = vmatpush1.msra.mxu0 0.0
    %264 = vmatprep.subr.mxu0 0.0
    %265 = vmatpush1.msra.mxu0 0.0
    %266 = vmatprep.subr.mxu0 0.0
    %267 = vmatpush1.msra.mxu0 0.0
    %268 = vmatprep.subr.mxu0 0.0
    %269 = vmatpush1.msra.mxu0 0.0
    %270 = vmatprep.subr.mxu0 0.0
    %271 = vmatpush1.msra.mxu0 0.0
    %272 = vmatprep.subr.mxu0 0.0
    %273 = vmatpush1.msra.mxu0 0.0
    %274 = vmatprep.subr.mxu0 0.0
    %275 = vmatpush1.msra.mxu0 0.0
    %276 = vmatprep.subr.mxu0 0.0
    %277 = vmatpush1.msra.mxu0 0.0
    %278 = vmatprep.subr.mxu0 0.0
    %279 = vmatpush1.msra.mxu0 0.0
    %280 = vmatprep.subr.mxu0 0.0
    %281 = vmatpush1.msra.mxu0 0.0
    %282 = vmatprep.mubr.f32.mxu0 0.0
    %283 = vmatmul.mubr.f32.gmra.mrb[0].mxu0 %v213
    %v284 = vpop.f32.mrb[0].mxu0
    %v285 = vadd.f32 0.0, %v284
    %v286 = vpop.f32.mrb[0].mxu0
    %287 = vmatprep.mubr.f32.mxu0 0.0
    %288 = vmatmul.mubr.f32.gmra.mrb[0].mxu0 %v216
    %v289 = vpop.f32.mrb[0].mxu0
    %v290 = vadd.f32 0.0, %v289
    %v291 = vpop.f32.mrb[0].mxu0
    %292 = vdwg.mxu0
    %v296 = vrot.slane %v113, 2
    %v297 = vrot.slane %v114, 2
    %v298 = vsel %vm47, %v296, %v297
    %v299 = vrot.slane %v115, 2
    %v300 = vsel %vm47, %v297, %v299
    %303 = vmatprep.subr.mxu0 0.0
    %304 = vmatpush1.msra.mxu0 %v298
    %305 = vmatprep.subr.mxu0 0.0
    %306 = vmatpush1.msra.mxu0 %v300
    %307 = vmatprep.subr.mxu0 0.0
    %308 = vmatpush1.msra.mxu0 0.0
    %309 = vmatprep.subr.mxu0 0.0
    %310 = vmatpush1.msra.mxu0 0.0
    %311 = vmatprep.subr.mxu0 0.0
    %312 = vmatpush1.msra.mxu0 0.0
    %313 = vmatprep.subr.mxu0 0.0
    %314 = vmatpush1.msra.mxu0 0.0
    %315 = vmatprep.subr.mxu0 0.0
    %316 = vmatpush1.msra.mxu0 0.0
    %317 = vmatprep.subr.mxu0 0.0
    %318 = vmatpush1.msra.mxu0 0.0
    %319 = vmatprep.subr.mxu0 0.0
    %320 = vmatpush1.msra.mxu0 0.0
    %321 = vmatprep.subr.mxu0 0.0
    %322 = vmatpush1.msra.mxu0 0.0
    %323 = vmatprep.subr.mxu0 0.0
    %324 = vmatpush1.msra.mxu0 0.0
    %325 = vmatprep.subr.mxu0 0.0
    %326 = vmatpush1.msra.mxu0 0.0
    %327 = vmatprep.subr.mxu0 0.0
    %328 = vmatpush1.msra.mxu0 0.0
    %329 = vmatprep.subr.mxu0 0.0
    %330 = vmatpush1.msra.mxu0 0.0
    %331 = vmatprep.subr.mxu0 0.0
    %332 = vmatpush1.msra.mxu0 0.0
    %333 = vmatprep.subr.mxu0 0.0
    %334 = vmatpush1.msra.mxu0 0.0
    %335 = vmatprep.subr.mxu0 0.0
    %336 = vmatpush1.msra.mxu0 0.0
    %337 = vmatprep.subr.mxu0 0.0
    %338 = vmatpush1.msra.mxu0 0.0
    %339 = vmatprep.subr.mxu0 0.0
    %340 = vmatpush1.msra.mxu0 0.0
    %341 = vmatprep.subr.mxu0 0.0
    %342 = vmatpush1.msra.mxu0 0.0
    %343 = vmatprep.subr.mxu0 0.0
    %344 = vmatpush1.msra.mxu0 0.0
    %345 = vmatprep.subr.mxu0 0.0
    %346 = vmatpush1.msra.mxu0 0.0
    %347 = vmatprep.subr.mxu0 0.0
    %348 = vmatpush1.msra.mxu0 0.0
    %349 = vmatprep.subr.mxu0 0.0
    %350 = vmatpush1.msra.mxu0 0.0
    %351 = vmatprep.subr.mxu0 0.0
    %352 = vmatpush1.msra.mxu0 0.0
    %353 = vmatprep.subr.mxu0 0.0
    %354 = vmatpush1.msra.mxu0 0.0
    %355 = vmatprep.subr.mxu0 0.0
    %356 = vmatpush1.msra.mxu0 0.0
    %357 = vmatprep.subr.mxu0 0.0
    %358 = vmatpush1.msra.mxu0 0.0
    %359 = vmatprep.subr.mxu0 0.0
    %360 = vmatpush1.msra.mxu0 0.0
    %361 = vmatprep.subr.mxu0 0.0
    %362 = vmatpush1.msra.mxu0 0.0
    %363 = vmatprep.subr.mxu0 0.0
    %364 = vmatpush1.msra.mxu0 0.0
    %365 = vmatprep.subr.mxu0 0.0
    %366 = vmatpush1.msra.mxu0 0.0
    %367 = vmatprep.mubr.f32.mxu0 0.0
    %368 = vmatmul.mubr.f32.gmra.mrb[0].mxu0 %v132
    %v369 = vpop.f32.mrb[0].mxu0
    %v370 = vadd.f32 0.0, %v369
    %v371 = vpop.f32.mrb[0].mxu0
    %372 = vmatprep.mubr.f32.mxu0 0.0
    %373 = vmatmul.mubr.f32.gmra.mrb[0].mxu0 %v135
    %v374 = vpop.f32.mrb[0].mxu0
    %v375 = vadd.f32 0.0, %v374
    %v376 = vpop.f32.mrb[0].mxu0
    %377 = vdwg.mxu0
    %v379 = vsel %vm130, %v370, 0
    %v382 = vsel %vm130, %v375, 0
    %384 = vmatprep.subr.mxu0 0.0
    %385 = vmatpush1.msra.mxu0 %v17
    %386 = vmatprep.subr.mxu0 0.0
    %387 = vmatpush1.msra.mxu0 %v18
    %388 = vmatprep.subr.mxu0 0.0
    %389 = vmatpush1.msra.mxu0 0.0
    %390 = vmatprep.subr.mxu0 0.0
    %391 = vmatpush1.msra.mxu0 0.0
    %392 = vmatprep.subr.mxu0 0.0
    %393 = vmatpush1.msra.mxu0 0.0
    %394 = vmatprep.subr.mxu0 0.0
    %395 = vmatpush1.msra.mxu0 0.0
    %396 = vmatprep.subr.mxu0 0.0
    %397 = vmatpush1.msra.mxu0 0.0
    %398 = vmatprep.subr.mxu0 0.0
    %399 = vmatpush1.msra.mxu0 0.0
    %400 = vmatprep.subr.mxu0 0.0
    %401 = vmatpush1.msra.mxu0 0.0
    %402 = vmatprep.subr.mxu0 0.0
    %403 = vmatpush1.msra.mxu0 0.0
    %404 = vmatprep.subr.mxu0 0.0
    %405 = vmatpush1.msra.mxu0 0.0
    %406 = vmatprep.subr.mxu0 0.0
    %407 = vmatpush1.msra.mxu0 0.0
    %408 = vmatprep.subr.mxu0 0.0
    %409 = vmatpush1.msra.mxu0 0.0
    %410 = vmatprep.subr.mxu0 0.0
    %411 = vmatpush1.msra.mxu0 0.0
    %412 = vmatprep.subr.mxu0 0.0
    %413 = vmatpush1.msra.mxu0 0.0
    %414 = vmatprep.subr.mxu0 0.0
    %415 = vmatpush1.msra.mxu0 0.0
    %416 = vmatprep.subr.mxu0 0.0
    %417 = vmatpush1.msra.mxu0 0.0
    %418 = vmatprep.subr.mxu0 0.0
    %419 = vmatpush1.msra.mxu0 0.0
    %420 = vmatprep.subr.mxu0 0.0
    %421 = vmatpush1.msra.mxu0 0.0
    %422 = vmatprep.subr.mxu0 0.0
    %423 = vmatpush1.msra.mxu0 0.0
    %424 = vmatprep.subr.mxu0 0.0
    %425 = vmatpush1.msra.mxu0 0.0
    %426 = vmatprep.subr.mxu0 0.0
    %427 = vmatpush1.msra.mxu0 0.0
    %428 = vmatprep.subr.mxu0 0.0
    %429 = vmatpush1.msra.mxu0 0.0
    %430 = vmatprep.subr.mxu0 0.0
    %431 = vmatpush1.msra.mxu0 0.0
    %432 = vmatprep.subr.mxu0 0.0
    %433 = vmatpush1.msra.mxu0 0.0
    %434 = vmatprep.subr.mxu0 0.0
    %435 = vmatpush1.msra.mxu0 0.0
    %436 = vmatprep.subr.mxu0 0.0
    %437 = vmatpush1.msra.mxu0 0.0
    %438 = vmatprep.subr.mxu0 0.0
    %439 = vmatpush1.msra.mxu0 0.0
    %440 = vmatprep.subr.mxu0 0.0
    %441 = vmatpush1.msra.mxu0 0.0
    %442 = vmatprep.subr.mxu0 0.0
    %443 = vmatpush1.msra.mxu0 0.0
    %444 = vmatprep.subr.mxu0 0.0
    %445 = vmatpush1.msra.mxu0 0.0
    %446 = vmatprep.subr.mxu0 0.0
    %447 = vmatpush1.msra.mxu0 0.0
    %448 = vmatprep.mubr.f32.mxu0 0.0
    %449 = vmatmul.mubr.f32.gmra.mrb[0].mxu0 %v379
    %v450 = vpop.f32.mrb[0].mxu0
    %v451 = vadd.f32 0.0, %v450
    %v452 = vpop.f32.mrb[0].mxu0
    %453 = vmatprep.mubr.f32.mxu0 0.0
    %454 = vmatmul.mubr.f32.gmra.mrb[0].mxu0 %v382
    %v455 = vpop.f32.mrb[0].mxu0
    %v456 = vadd.f32 0.0, %v455
    %v457 = vpop.f32.mrb[0].mxu0
    %458 = vdwg.mxu0
    %v459 = vrsqrt.pop %v285
    %v460 = vmul.f32 %v285, %v459
    %vm461 = vcmp.eq.f32.partialorder %v285, inf
    %v462 = vsel %vm461, %v285, %v460
    %vm463 = vcmp.eq.f32.partialorder %v285, 0.0
    %v464 = vand.u32 %v285, 2147483648
    %v465 = vsel %vm463, %v464, %v462
    %v466 = vrsqrt.pop %v290
    %v467 = vmul.f32 %v290, %v466
    %vm468 = vcmp.eq.f32.partialorder %v290, inf
    %v469 = vsel %vm468, %v290, %v467
    %vm470 = vcmp.eq.f32.partialorder %v290, 0.0
    %v471 = vand.u32 %v290, 2147483648
    %v472 = vsel %vm470, %v471, %v469
    %v473 = vand.u32 2147483647, %v451
    %v474 = vand.u32 2147483647, %v456
    %v475 = vrcp.pop %v473
    %v476 = vrcp.pop %v474
    %v477 = vmul.f32 %v473, %v475
    %v478 = vmul.f32 %v474, %v476
    %v479 = vsub.f32 2.0, %v477
    %v480 = vsub.f32 2.0, %v478
    %v481 = vmul.f32 %v475, %v479
    %v482 = vmul.f32 %v476, %v480
    %v483 = vmul.f32 %v451, %v481
    %v484 = vmul.f32 %v456, %v482
    %v485 = vadd.f32 %v465, 0.0
    %v486 = vadd.f32 %v472, 0.0
    %v487 = vadd.f32 %v485, %v483
    %v488 = vadd.f32 %v486, %v484
    %v489 = vadd.f32 %v487, 0.0002
    %v490 = vadd.f32 %v488, 0.0002
    %s491 = scalar_lea.vmem %s0, 24
    %v492 = vld [vmem:[%s491] sm:$0xff]
    %v493 = vld [vmem:[%s491 + $0x8] sm:$0xff]
    %v494 = vld [vmem:[%s491 + $0x10] sm:$0x3]
    %v498 = vrot.slane %v492, 1
    %v499 = vrot.slane %v493, 1
    %v500 = vsel %vm25, %v498, %v499
    %v501 = vrot.slane %v494, 1
    %v502 = vsel %vm25, %v499, %v501
    %v506 = vadd.f32 %v492, %v500
    %v507 = vadd.f32 %v493, %v502
    %v508 = vadd.f32 %v494, %v501
    %v509 = vrot.slane %v492, 7
    %v510 = vrot.slane %v493, 7
    %v511 = vsel %vm37, %v509, %v510
    %v515 = vsub.f32 %v506, %v509
    %v516 = vsub.f32 %v507, %v511
    %v517 = vsub.f32 %v508, %v510
    %v518 = vrot.slane %v492, 2
    %v519 = vrot.slane %v493, 2
    %v520 = vsel %vm47, %v518, %v519
    %v521 = vrot.slane %v494, 2
    %v522 = vsel %vm47, %v519, %v521
    %v525 = vadd.f32 %v506, %v520
    %v526 = vadd.f32 %v507, %v522
    %v529 = vrot.slane %v525, 7
    %v530 = vrot.slane %v526, 7
    %v531 = vsel %vm37, %v529, %v530
    %532 = vrot.lane.b32.xlu0 %v529, 2
    %v533 = vpop.permute.xlu0 %532
    %534 = vrot.lane.b32.xlu0 %v531, 2
    %v535 = vpop.permute.xlu0 %534
    %536 = vrot.lane.b32.xlu0 %v530, 2
    %v537 = vpop.permute.xlu0 %536
    %v541 = vsub.f32 %v515, %v533
    %v542 = vsub.f32 %v516, %v535
    %v543 = vsub.f32 %v517, %v537
    %v544 = vand.u32 2147483647, %v541
    %v545 = vand.u32 2147483647, %v542
    %v546 = vand.u32 2147483647, %v543
    %547 = vrot.lane.b32.xlu0 %v492, 127
    %v548 = vpop.permute.xlu0 %547
    %549 = vrot.lane.b32.xlu0 %v493, 127
    %v550 = vpop.permute.xlu0 %549
    %551 = vrot.lane.b32.xlu0 %v494, 127
    %v552 = vpop.permute.xlu0 %551
    %v556 = vadd.f32 %v492, %v548
    %v557 = vadd.f32 %v493, %v550
    %v558 = vadd.f32 %v494, %v552
    %559 = vrot.lane.b32.xlu0 %v492, 126
    %v560 = vpop.permute.xlu0 %559
    %561 = vrot.lane.b32.xlu0 %v493, 126
    %v562 = vpop.permute.xlu0 %561
    %563 = vrot.lane.b32.xlu0 %v494, 126
    %v564 = vpop.permute.xlu0 %563
    %v568 = vadd.f32 %v556, %v560
    %v569 = vadd.f32 %v557, %v562
    %v570 = vadd.f32 %v558, %v564
    %v573 = vrot.slane %v568, 6
    %v574 = vrot.slane %v569, 6
    %v575 = vsel %vm103, %v573, %v574
    %v579 = vsub.f32 %v568, %v573
    %v580 = vsub.f32 %v569, %v575
    %v581 = vsub.f32 %v570, %v574
    %v582 = vand.u32 2147483647, %v579
    %v583 = vand.u32 2147483647, %v580
    %v584 = vand.u32 2147483647, %v581
    %v588 = vrot.slane %v544, 1
    %v589 = vrot.slane %v545, 1
    %v590 = vsel %vm25, %v588, %v589
    %v591 = vrot.slane %v546, 1
    %v592 = vsel %vm25, %v589, %v591
    %593 = vrot.lane.b32.xlu0 %v590, 126
    %v594 = vpop.permute.xlu0 %593
    %595 = vrot.lane.b32.xlu0 %v592, 126
    %v596 = vpop.permute.xlu0 %595
    %599 = vmatprep.subr.mxu0 0.0
    %600 = vmatpush1.msra.mxu0 %v594
    %601 = vmatprep.subr.mxu0 0.0
    %602 = vmatpush1.msra.mxu0 %v596
    %603 = vmatprep.subr.mxu0 0.0
    %604 = vmatpush1.msra.mxu0 0.0
    %605 = vmatprep.subr.mxu0 0.0
    %606 = vmatpush1.msra.mxu0 0.0
    %607 = vmatprep.subr.mxu0 0.0
    %608 = vmatpush1.msra.mxu0 0.0
    %609 = vmatprep.subr.mxu0 0.0
    %610 = vmatpush1.msra.mxu0 0.0
    %611 = vmatprep.subr.mxu0 0.0
    %612 = vmatpush1.msra.mxu0 0.0
    %613 = vmatprep.subr.mxu0 0.0
    %614 = vmatpush1.msra.mxu0 0.0
    %615 = vmatprep.subr.mxu0 0.0
    %616 = vmatpush1.msra.mxu0 0.0
    %617 = vmatprep.subr.mxu0 0.0
    %618 = vmatpush1.msra.mxu0 0.0
    %619 = vmatprep.subr.mxu0 0.0
    %620 = vmatpush1.msra.mxu0 0.0
    %621 = vmatprep.subr.mxu0 0.0
    %622 = vmatpush1.msra.mxu0 0.0
    %623 = vmatprep.subr.mxu0 0.0
    %624 = vmatpush1.msra.mxu0 0.0
    %625 = vmatprep.subr.mxu0 0.0
    %626 = vmatpush1.msra.mxu0 0.0
    %627 = vmatprep.subr.mxu0 0.0
    %628 = vmatpush1.msra.mxu0 0.0
    %629 = vmatprep.subr.mxu0 0.0
    %630 = vmatpush1.msra.mxu0 0.0
    %631 = vmatprep.subr.mxu0 0.0
    %632 = vmatpush1.msra.mxu0 0.0
    %633 = vmatprep.subr.mxu0 0.0
    %634 = vmatpush1.msra.mxu0 0.0
    %635 = vmatprep.subr.mxu0 0.0
    %636 = vmatpush1.msra.mxu0 0.0
    %637 = vmatprep.subr.mxu0 0.0
    %638 = vmatpush1.msra.mxu0 0.0
    %639 = vmatprep.subr.mxu0 0.0
    %640 = vmatpush1.msra.mxu0 0.0
    %641 = vmatprep.subr.mxu0 0.0
    %642 = vmatpush1.msra.mxu0 0.0
    %643 = vmatprep.subr.mxu0 0.0
    %644 = vmatpush1.msra.mxu0 0.0
    %645 = vmatprep.subr.mxu0 0.0
    %646 = vmatpush1.msra.mxu0 0.0
    %647 = vmatprep.subr.mxu0 0.0
    %648 = vmatpush1.msra.mxu0 0.0
    %649 = vmatprep.subr.mxu0 0.0
    %650 = vmatpush1.msra.mxu0 0.0
    %651 = vmatprep.subr.mxu0 0.0
    %652 = vmatpush1.msra.mxu0 0.0
    %653 = vmatprep.subr.mxu0 0.0
    %654 = vmatpush1.msra.mxu0 0.0
    %655 = vmatprep.subr.mxu0 0.0
    %656 = vmatpush1.msra.mxu0 0.0
    %657 = vmatprep.subr.mxu0 0.0
    %658 = vmatpush1.msra.mxu0 0.0
    %659 = vmatprep.subr.mxu0 0.0
    %660 = vmatpush1.msra.mxu0 0.0
    %661 = vmatprep.subr.mxu0 0.0
    %662 = vmatpush1.msra.mxu0 0.0
    %663 = vmatprep.mubr.f32.mxu0 0.0
    %664 = vmatmul.mubr.f32.gmra.mrb[0].mxu0 %v132
    %v665 = vpop.f32.mrb[0].mxu0
    %v666 = vadd.f32 0.0, %v665
    %v667 = vpop.f32.mrb[0].mxu0
    %668 = vmatprep.mubr.f32.mxu0 0.0
    %669 = vmatmul.mubr.f32.gmra.mrb[0].mxu0 %v135
    %v670 = vpop.f32.mrb[0].mxu0
    %v671 = vadd.f32 0.0, %v670
    %v672 = vpop.f32.mrb[0].mxu0
    %673 = vdwg.mxu0
    %v675 = vsel %vm130, %v666, 0
    %v678 = vsel %vm130, %v671, 0
    %680 = vmatprep.subr.mxu0 0.0
    %681 = vmatpush1.msra.mxu0 %v17
    %682 = vmatprep.subr.mxu0 0.0
    %683 = vmatpush1.msra.mxu0 %v18
    %684 = vmatprep.subr.mxu0 0.0
    %685 = vmatpush1.msra.mxu0 0.0
    %686 = vmatprep.subr.mxu0 0.0
    %687 = vmatpush1.msra.mxu0 0.0
    %688 = vmatprep.subr.mxu0 0.0
    %689 = vmatpush1.msra.mxu0 0.0
    %690 = vmatprep.subr.mxu0 0.0
    %691 = vmatpush1.msra.mxu0 0.0
    %692 = vmatprep.subr.mxu0 0.0
    %693 = vmatpush1.msra.mxu0 0.0
    %694 = vmatprep.subr.mxu0 0.0
    %695 = vmatpush1.msra.mxu0 0.0
    %696 = vmatprep.subr.mxu0 0.0
    %697 = vmatpush1.msra.mxu0 0.0
    %698 = vmatprep.subr.mxu0 0.0
    %699 = vmatpush1.msra.mxu0 0.0
    %700 = vmatprep.subr.mxu0 0.0
    %701 = vmatpush1.msra.mxu0 0.0
    %702 = vmatprep.subr.mxu0 0.0
    %703 = vmatpush1.msra.mxu0 0.0
    %704 = vmatprep.subr.mxu0 0.0
    %705 = vmatpush1.msra.mxu0 0.0
    %706 = vmatprep.subr.mxu0 0.0
    %707 = vmatpush1.msra.mxu0 0.0
    %708 = vmatprep.subr.mxu0 0.0
    %709 = vmatpush1.msra.mxu0 0.0
    %710 = vmatprep.subr.mxu0 0.0
    %711 = vmatpush1.msra.mxu0 0.0
    %712 = vmatprep.subr.mxu0 0.0
    %713 = vmatpush1.msra.mxu0 0.0
    %714 = vmatprep.subr.mxu0 0.0
    %715 = vmatpush1.msra.mxu0 0.0
    %716 = vmatprep.subr.mxu0 0.0
    %717 = vmatpush1.msra.mxu0 0.0
    %718 = vmatprep.subr.mxu0 0.0
    %719 = vmatpush1.msra.mxu0 0.0
    %720 = vmatprep.subr.mxu0 0.0
    %721 = vmatpush1.msra.mxu0 0.0
    %722 = vmatprep.subr.mxu0 0.0
    %723 = vmatpush1.msra.mxu0 0.0
    %724 = vmatprep.subr.mxu0 0.0
    %725 = vmatpush1.msra.mxu0 0.0
    %726 = vmatprep.subr.mxu0 0.0
    %727 = vmatpush1.msra.mxu0 0.0
    %728 = vmatprep.subr.mxu0 0.0
    %729 = vmatpush1.msra.mxu0 0.0
    %730 = vmatprep.subr.mxu0 0.0
    %731 = vmatpush1.msra.mxu0 0.0
    %732 = vmatprep.subr.mxu0 0.0
    %733 = vmatpush1.msra.mxu0 0.0
    %734 = vmatprep.subr.mxu0 0.0
    %735 = vmatpush1.msra.mxu0 0.0
    %736 = vmatprep.subr.mxu0 0.0
    %737 = vmatpush1.msra.mxu0 0.0
    %738 = vmatprep.subr.mxu0 0.0
    %739 = vmatpush1.msra.mxu0 0.0
    %740 = vmatprep.subr.mxu0 0.0
    %741 = vmatpush1.msra.mxu0 0.0
    %742 = vmatprep.subr.mxu0 0.0
    %743 = vmatpush1.msra.mxu0 0.0
    %744 = vmatprep.mubr.f32.mxu0 0.0
    %745 = vmatmul.mubr.f32.gmra.mrb[0].mxu0 %v675
    %v746 = vpop.f32.mrb[0].mxu0
    %v747 = vadd.f32 0.0, %v746
    %v748 = vpop.f32.mrb[0].mxu0
    %749 = vmatprep.mubr.f32.mxu0 0.0
    %750 = vmatmul.mubr.f32.gmra.mrb[0].mxu0 %v678
    %v751 = vpop.f32.mrb[0].mxu0
    %v752 = vadd.f32 0.0, %v751
    %v753 = vpop.f32.mrb[0].mxu0
    %754 = vdwg.mxu0
    %v758 = vrot.slane %v582, 2
    %v759 = vrot.slane %v583, 2
    %v760 = vsel %vm47, %v758, %v759
    %v761 = vrot.slane %v584, 2
    %v762 = vsel %vm47, %v759, %v761
    %765 = vmatprep.subr.mxu0 0.0
    %766 = vmatpush1.msra.mxu0 %v760
    %767 = vmatprep.subr.mxu0 0.0
    %768 = vmatpush1.msra.mxu0 %v762
    %769 = vmatprep.subr.mxu0 0.0
    %770 = vmatpush1.msra.mxu0 0.0
    %771 = vmatprep.subr.mxu0 0.0
    %772 = vmatpush1.msra.mxu0 0.0
    %773 = vmatprep.subr.mxu0 0.0
    %774 = vmatpush1.msra.mxu0 0.0
    %775 = vmatprep.subr.mxu0 0.0
    %776 = vmatpush1.msra.mxu0 0.0
    %777 = vmatprep.subr.mxu0 0.0
    %778 = vmatpush1.msra.mxu0 0.0
    %779 = vmatprep.subr.mxu0 0.0
    %780 = vmatpush1.msra.mxu0 0.0
    %781 = vmatprep.subr.mxu0 0.0
    %782 = vmatpush1.msra.mxu0 0.0
    %783 = vmatprep.subr.mxu0 0.0
    %784 = vmatpush1.msra.mxu0 0.0
    %785 = vmatprep.subr.mxu0 0.0
    %786 = vmatpush1.msra.mxu0 0.0
    %787 = vmatprep.subr.mxu0 0.0
    %788 = vmatpush1.msra.mxu0 0.0
    %789 = vmatprep.subr.mxu0 0.0
    %790 = vmatpush1.msra.mxu0 0.0
    %791 = vmatprep.subr.mxu0 0.0
    %792 = vmatpush1.msra.mxu0 0.0
    %793 = vmatprep.subr.mxu0 0.0
    %794 = vmatpush1.msra.mxu0 0.0
    %795 = vmatprep.subr.mxu0 0.0
    %796 = vmatpush1.msra.mxu0 0.0
    %797 = vmatprep.subr.mxu0 0.0
    %798 = vmatpush1.msra.mxu0 0.0
    %799 = vmatprep.subr.mxu0 0.0
    %800 = vmatpush1.msra.mxu0 0.0
    %801 = vmatprep.subr.mxu0 0.0
    %802 = vmatpush1.msra.mxu0 0.0
    %803 = vmatprep.subr.mxu0 0.0
    %804 = vmatpush1.msra.mxu0 0.0
    %805 = vmatprep.subr.mxu0 0.0
    %806 = vmatpush1.msra.mxu0 0.0
    %807 = vmatprep.subr.mxu0 0.0
    %808 = vmatpush1.msra.mxu0 0.0
    %809 = vmatprep.subr.mxu0 0.0
    %810 = vmatpush1.msra.mxu0 0.0
    %811 = vmatprep.subr.mxu0 0.0
    %812 = vmatpush1.msra.mxu0 0.0
    %813 = vmatprep.subr.mxu0 0.0
    %814 = vmatpush1.msra.mxu0 0.0
    %815 = vmatprep.subr.mxu0 0.0
    %816 = vmatpush1.msra.mxu0 0.0
    %817 = vmatprep.subr.mxu0 0.0
    %818 = vmatpush1.msra.mxu0 0.0
    %819 = vmatprep.subr.mxu0 0.0
    %820 = vmatpush1.msra.mxu0 0.0
    %821 = vmatprep.subr.mxu0 0.0
    %822 = vmatpush1.msra.mxu0 0.0
    %823 = vmatprep.subr.mxu0 0.0
    %824 = vmatpush1.msra.mxu0 0.0
    %825 = vmatprep.subr.mxu0 0.0
    %826 = vmatpush1.msra.mxu0 0.0
    %827 = vmatprep.subr.mxu0 0.0
    %828 = vmatpush1.msra.mxu0 0.0
    %829 = vmatprep.mubr.f32.mxu0 0.0
    %830 = vmatmul.mubr.f32.gmra.mrb[0].mxu0 %v132
    %v831 = vpop.f32.mrb[0].mxu0
    %v832 = vadd.f32 0.0, %v831
    %v833 = vpop.f32.mrb[0].mxu0
    %834 = vmatprep.mubr.f32.mxu0 0.0
    %835 = vmatmul.mubr.f32.gmra.mrb[0].mxu0 %v135
    %v836 = vpop.f32.mrb[0].mxu0
    %v837 = vadd.f32 0.0, %v836
    %v838 = vpop.f32.mrb[0].mxu0
    %839 = vdwg.mxu0
    %v841 = vsel %vm130, %v832, 0
    %v844 = vsel %vm130, %v837, 0
    %846 = vmatprep.subr.mxu0 0.0
    %847 = vmatpush1.msra.mxu0 %v17
    %848 = vmatprep.subr.mxu0 0.0
    %849 = vmatpush1.msra.mxu0 %v18
    %850 = vmatprep.subr.mxu0 0.0
    %851 = vmatpush1.msra.mxu0 0.0
    %852 = vmatprep.subr.mxu0 0.0
    %853 = vmatpush1.msra.mxu0 0.0
    %854 = vmatprep.subr.mxu0 0.0
    %855 = vmatpush1.msra.mxu0 0.0
    %856 = vmatprep.subr.mxu0 0.0
    %857 = vmatpush1.msra.mxu0 0.0
    %858 = vmatprep.subr.mxu0 0.0
    %859 = vmatpush1.msra.mxu0 0.0
    %860 = vmatprep.subr.mxu0 0.0
    %861 = vmatpush1.msra.mxu0 0.0
    %862 = vmatprep.subr.mxu0 0.0
    %863 = vmatpush1.msra.mxu0 0.0
    %864 = vmatprep.subr.mxu0 0.0
    %865 = vmatpush1.msra.mxu0 0.0
    %866 = vmatprep.subr.mxu0 0.0
    %867 = vmatpush1.msra.mxu0 0.0
    %868 = vmatprep.subr.mxu0 0.0
    %869 = vmatpush1.msra.mxu0 0.0
    %870 = vmatprep.subr.mxu0 0.0
    %871 = vmatpush1.msra.mxu0 0.0
    %872 = vmatprep.subr.mxu0 0.0
    %873 = vmatpush1.msra.mxu0 0.0
    %874 = vmatprep.subr.mxu0 0.0
    %875 = vmatpush1.msra.mxu0 0.0
    %876 = vmatprep.subr.mxu0 0.0
    %877 = vmatpush1.msra.mxu0 0.0
    %878 = vmatprep.subr.mxu0 0.0
    %879 = vmatpush1.msra.mxu0 0.0
    %880 = vmatprep.subr.mxu0 0.0
    %881 = vmatpush1.msra.mxu0 0.0
    %882 = vmatprep.subr.mxu0 0.0
    %883 = vmatpush1.msra.mxu0 0.0
    %884 = vmatprep.subr.mxu0 0.0
    %885 = vmatpush1.msra.mxu0 0.0
    %886 = vmatprep.subr.mxu0 0.0
    %887 = vmatpush1.msra.mxu0 0.0
    %888 = vmatprep.subr.mxu0 0.0
    %889 = vmatpush1.msra.mxu0 0.0
    %890 = vmatprep.subr.mxu0 0.0
    %891 = vmatpush1.msra.mxu0 0.0
    %892 = vmatprep.subr.mxu0 0.0
    %893 = vmatpush1.msra.mxu0 0.0
    %894 = vmatprep.subr.mxu0 0.0
    %895 = vmatpush1.msra.mxu0 0.0
    %896 = vmatprep.subr.mxu0 0.0
    %897 = vmatpush1.msra.mxu0 0.0
    %898 = vmatprep.subr.mxu0 0.0
    %899 = vmatpush1.msra.mxu0 0.0
    %900 = vmatprep.subr.mxu0 0.0
    %901 = vmatpush1.msra.mxu0 0.0
    %902 = vmatprep.subr.mxu0 0.0
    %903 = vmatpush1.msra.mxu0 0.0
    %904 = vmatprep.subr.mxu0 0.0
    %905 = vmatpush1.msra.mxu0 0.0
    %906 = vmatprep.subr.mxu0 0.0
    %907 = vmatpush1.msra.mxu0 0.0
    %908 = vmatprep.subr.mxu0 0.0
    %909 = vmatpush1.msra.mxu0 0.0
    %910 = vmatprep.mubr.f32.mxu0 0.0
    %911 = vmatmul.mubr.f32.gmra.mrb[0].mxu0 %v841
    %v912 = vpop.f32.mrb[0].mxu0
    %v913 = vadd.f32 0.0, %v912
    %v914 = vpop.f32.mrb[0].mxu0
    %915 = vmatprep.mubr.f32.mxu0 0.0
    %916 = vmatmul.mubr.f32.gmra.mrb[0].mxu0 %v844
    %v917 = vpop.f32.mrb[0].mxu0
    %v918 = vadd.f32 0.0, %v917
    %v919 = vpop.f32.mrb[0].mxu0
    %920 = vdwg.mxu0
    %v921 = vrsqrt.pop %v747
    %v922 = vmul.f32 %v747, %v921
    %vm923 = vcmp.eq.f32.partialorder %v747, inf
    %v924 = vsel %vm923, %v747, %v922
    %vm925 = vcmp.eq.f32.partialorder %v747, 0.0
    %v926 = vand.u32 %v747, 2147483648
    %v927 = vsel %vm925, %v926, %v924
    %v928 = vrsqrt.pop %v752
    %v929 = vmul.f32 %v752, %v928
    %vm930 = vcmp.eq.f32.partialorder %v752, inf
    %v931 = vsel %vm930, %v752, %v929
    %vm932 = vcmp.eq.f32.partialorder %v752, 0.0
    %v933 = vand.u32 %v752, 2147483648
    %v934 = vsel %vm932, %v933, %v931
    %v935 = vand.u32 2147483647, %v913
    %v936 = vand.u32 2147483647, %v918
    %v937 = vrcp.pop %v935
    %v938 = vrcp.pop %v936
    %v939 = vmul.f32 %v935, %v937
    %v940 = vmul.f32 %v936, %v938
    %v941 = vsub.f32 2.0, %v939
    %v942 = vsub.f32 2.0, %v940
    %v943 = vmul.f32 %v937, %v941
    %v944 = vmul.f32 %v938, %v942
    %v945 = vmul.f32 %v913, %v943
    %v946 = vmul.f32 %v918, %v944
    %v947 = vadd.f32 %v489, %v927
    %v948 = vadd.f32 %v490, %v934
    %v949 = vadd.f32 %v947, %v945
    %v950 = vadd.f32 %v948, %v946
    %v951 = vadd.f32 %v949, 0.0002
    %v952 = vadd.f32 %v950, 0.0002
    %p953 = scmp.eq.s32.totalorder 0, 0
    // Predicated region
    $region14: #{tpu_custom_call.1} parent=1 // pred_check
      %p954 = pneg %p953
    $region15: #{tpu_custom_call.1} parent=1 // pred_check_branch
      %956 = sbr.rel (%p954) target = $region17
    $region16: #{tpu_custom_call.1} parent=1 // pred_region
      %957 = vst.msk [vmem:[#allocation2] sm:$0xff] %vm130, 0.0
      %958 = vst.msk [vmem:[#allocation2 + $0x8] sm:$0xff] %vm130, 0.0
      %vm959 = vcmask 0
      %960 = vst.msk [vmem:[#allocation3] sm:$0x1] %vm959, 0.0
    $region17: #{tpu_custom_call.1} parent=1 // pred_fallthru
      _
    %v961 = vld [vmem:[#allocation2] sm:$0xff]
    %v962 = vld [vmem:[#allocation2 + $0x8] sm:$0xff]
    %v963 = vadd.f32 %v961, %v951
    %v964 = vadd.f32 %v962, %v952
    %965 = vst.msk [vmem:[#allocation2] sm:$0xff] %vm130, %v963
    %966 = vst.msk [vmem:[#allocation2 + $0x8] sm:$0xff] %vm130, %v964
    // Predicated region
    $region18: #{tpu_custom_call.1} parent=1 // pred_check
      %p967 = pneg %p953
    $region19: #{tpu_custom_call.1} parent=1 // pred_check_branch
      %969 = sbr.rel (%p967) target = $region21
    $region20: #{tpu_custom_call.1} parent=1 // pred_region
      %v970 = vld [vmem:[#allocation2] sm:$0xff]
      %v971 = vld [vmem:[#allocation2 + $0x8] sm:$0xff]
      %v972 = vsel %vm130, %v970, 0.0
      %v973 = vsel %vm130, %v971, 0.0
      %v974 = vadd.f32 %v972, %v973
      %975 = vadd.xlane.f32.xlu0 %v974
      %v976 = vpop.xlane.xlu0 %975
      %v977 = vrot.slane %v976, 4
      %v978 = vadd.f32 %v976, %v977
      %v979 = vrot.slane %v978, 2
      %v980 = vadd.f32 %v978, %v979
      %v981 = vrot.slane %v980, 1
      %v982 = vadd.f32 %v980, %v981
      %s983 = vtos %v982
      %s984 = smul.f32 %s983, 0.001953125
      %v985 = vstv %s984
      %vm986 = vcmask 0
      %987 = vst.msk [vmem:[#allocation3] sm:$0x1] %vm986, %v985
    $region21: #{tpu_custom_call.1} parent=1 // pred_fallthru
      _
    // Predicated region
    $region22: #{tpu_custom_call.1} parent=1 // pred_check
      _
    $region23: #{tpu_custom_call.1} parent=1 // pred_check_branch
      %989 = sbr.rel (0) target = $region25
    $region24: #{tpu_custom_call.1} parent=1 // pred_region
      %s991 = ssub.s32 16, 16
      %992 = vsyncadd [#allocation4], %s991
      %s994 = sshll.u32 [#allocation3], 4
      %s995 = int_to_ptr.vmem [resolvable:$true] %s994
      %997 = dma.vmem_to_hbm [thread:$0]  %s995, 16, %s3, [#allocation4]
    $region25: #{tpu_custom_call.1} parent=1 // pred_fallthru
      _
    // Predicated region
    $region26: #{tpu_custom_call.1} parent=1 // pred_check
      _
    $region27: #{tpu_custom_call.1} parent=1 // pred_check_branch
      %999 = sbr.rel (0) target = $region29
    $region28: #{tpu_custom_call.1} parent=1 // pred_region
      %1000 = dma.done [#allocation4], 16
    $region29: #{tpu_custom_call.1} parent=1 // pred_fallthru
      _
    %1001 = vsyncpa [#allocation4], 1

</llo_original>
